<compile_context>
chip_gen: v7x
topology: tpu7x:2x2x1
jax: 0.10.0
libtpu: 0.0.40
codegen_flags: <defaults>
</compile_context>

<pallas_src>
import functools

import jax
import jax.numpy as jnp
from jax.experimental import pallas as pl
from jax.experimental.pallas import tpu as pltpu


NEG_MASK = -1e9  # folded into padded action lanes so softmax ignores them


def _round_up(n, m):
    return ((n + m - 1) // m) * m


def actor_kernel(x_ref, w1_ref, w2_ref, w3_ref, probs_ref):
    x = x_ref[...]                                  # (TB, Sp) bf16, ones column carried

    # Layer 1: Linear (+ folded bias) + ReLU. f32 accumulate on the MXU.
    h1 = jnp.dot(x, w1_ref[...], preferred_element_type=jnp.float32)
    h1 = jnp.maximum(h1, 0.0).astype(x.dtype)       # ones-carry column stays exactly 1

    # Layer 2: Linear (+ folded bias) + ReLU.
    h2 = jnp.dot(h1, w2_ref[...], preferred_element_type=jnp.float32)
    h2 = jnp.maximum(h2, 0.0).astype(x.dtype)

    # Layer 3: Linear (+ folded bias, padded lanes get -1e9) + Softmax(dim=-1).
    logits = jnp.dot(h2, w3_ref[...], preferred_element_type=jnp.float32)
    m = jnp.max(logits, axis=-1, keepdims=True)
    e = jnp.exp(logits - m)
    denom = jnp.sum(e, axis=-1, keepdims=True)
    probs_ref[...] = (e * pl.reciprocal(denom, approx=True)).astype(probs_ref.dtype)


def _vmem_budget_bytes(tb, sp, hp, ap, compute_bytes, acc_bytes):
    weights = (sp * hp + hp * hp + hp * ap) * compute_bytes
    streams = 2 * tb * sp * compute_bytes + 2 * tb * ap * acc_bytes  # dbl-buffered in/out
    live_acts = 3 * tb * hp * acc_bytes                              # h1/h2/logits in f32
    est = 2 * (weights + streams + live_acts)                        # 2x slack
    return int(min(max(est, 32 * 1024 * 1024), 48 * 1024 * 1024))    # v7x-safe ceiling


def actor_forward(x, params, *, tb=128, compute_dtype=jnp.bfloat16):
    """x: (B, state_num) f32. params: weights (in, out), biases (1, out).
    Returns Categorical probs of shape (B, action_num), f32."""
    w1, b1 = params["w1"], params["b1"]
    w2, b2 = params["w2"], params["b2"]
    w3, b3 = params["w3"], params["b3"]

    B, S = x.shape
    H = w1.shape[1]
    A = w3.shape[1]

    Sp = _round_up(S + 1, 128)       # +1 lane carries the "ones" column (bias fold)
    Hp = _round_up(H + 1, 128)       # +1 lane carries the ones column between layers
    Ap = _round_up(A, 128)           # lane-dense output
    Bp = _round_up(B, tb)

    cd = compute_dtype

    # x padded: real features, a ones column at lane S, zeros elsewhere.
    xp = jnp.zeros((Bp, Sp), cd)
    xp = xp.at[:B, :S].set(x.astype(cd))
    xp = xp.at[:, S].set(jnp.asarray(1.0, cd))

    # W1 padded: bias b1 folded into row S; W1[S, H] = 1 keeps the ones column alive.
    w1p = jnp.zeros((Sp, Hp), cd)
    w1p = w1p.at[:S, :H].set(w1.astype(cd))
    w1p = w1p.at[S, :H].set(b1.reshape(-1).astype(cd))
    w1p = w1p.at[S, H].set(jnp.asarray(1.0, cd))

    # W2 padded: bias b2 folded into row H; W2[H, H] = 1 carries the ones column.
    w2p = jnp.zeros((Hp, Hp), cd)
    w2p = w2p.at[:H, :H].set(w2.astype(cd))
    w2p = w2p.at[H, :H].set(b2.reshape(-1).astype(cd))
    w2p = w2p.at[H, H].set(jnp.asarray(1.0, cd))

    # W3 padded: bias b3 folded into row H; padded action lanes get -1e9 so the
    # in-kernel softmax masks them out exactly.
    w3p = jnp.full((Hp, Ap), NEG_MASK, cd)
    w3p = w3p.at[:H, :].set(jnp.zeros((H, Ap), cd))
    w3p = w3p.at[:H, :A].set(w3.astype(cd))
    w3p = w3p.at[H, :A].set(b3.reshape(-1).astype(cd))
    w3p = w3p.at[H + 1:, :].set(jnp.zeros((Hp - H - 1, Ap), cd))

    vmem_limit = _vmem_budget_bytes(tb, Sp, Hp, Ap,
                                    compute_bytes=jnp.dtype(cd).itemsize,
                                    acc_bytes=4)

    probs_padded = pl.pallas_call(
        actor_kernel,
        out_shape=jax.ShapeDtypeStruct((Bp, Ap), jnp.float32),
        grid=(Bp // tb,),
        in_specs=[
            pl.BlockSpec((tb, Sp), lambda i: (i, 0)),   # streamed activations
            pl.BlockSpec((Sp, Hp), lambda i: (0, 0)),   # resident weights
            pl.BlockSpec((Hp, Hp), lambda i: (0, 0)),
            pl.BlockSpec((Hp, Ap), lambda i: (0, 0)),
        ],
        out_specs=pl.BlockSpec((tb, Ap), lambda i: (i, 0)),
        compiler_params=pltpu.CompilerParams(
            dimension_semantics=("parallel",),          # v7x dual-TC sharding
            vmem_limit_bytes=vmem_limit,
        ),
    )(xp, w1p, w2p, w3p)

    return probs_padded[:B, :A]


def init_params(key, state_num, hidden_units_num, action_num):
    """Deterministic init mimicking nn.Linear default (uniform +-1/sqrt(fan_in)).
    Weights stored as (in, out) = transpose of PyTorch's (out, in)."""
    ks = jax.random.split(key, 6)

    def lin(kw, kb, fan_in, fan_out):
        bound = 1.0 / jnp.sqrt(fan_in)
        w = jax.random.uniform(kw, (fan_in, fan_out), jnp.float32, -bound, bound)
        b = jax.random.uniform(kb, (1, fan_out), jnp.float32, -bound, bound)
        return w, b

    w1, b1 = lin(ks[0], ks[1], state_num, hidden_units_num)
    w2, b2 = lin(ks[2], ks[3], hidden_units_num, hidden_units_num)
    w3, b3 = lin(ks[4], ks[5], hidden_units_num, action_num)
    return {"w1": w1, "b1": b1, "w2": w2, "b2": b2, "w3": w3, "b3": b3}


def _ref_forward(x, params, dtype):
    """Plain-JAX reference that mirrors the kernel's cast pattern
    (bf16 matmul inputs, f32 accumulation, f32 elementwise)."""
    c = lambda a: a.astype(dtype)
    h1 = jnp.maximum(
        jnp.dot(c(x), c(params["w1"]), preferred_element_type=jnp.float32)
        + c(params["b1"]).astype(jnp.float32), 0.0)
    h2 = jnp.maximum(
        jnp.dot(c(h1), c(params["w2"]), preferred_element_type=jnp.float32)
        + c(params["b2"]).astype(jnp.float32), 0.0)
    logits = (jnp.dot(c(h2), c(params["w3"]), preferred_element_type=jnp.float32)
              + c(params["b3"]).astype(jnp.float32))
    return jax.nn.softmax(logits, axis=-1)


if __name__ == "__main__":
    # Small shapes consistent with the module: state_num=16, hidden=32, action_num=8.
    batch, state_num, hidden_units_num, action_num = 2, 16, 32, 8

    key = jax.random.PRNGKey(0)
    k_x, k_p = jax.random.split(key)
    x = jax.random.normal(k_x, (batch, state_num), jnp.float32)
    params = init_params(k_p, state_num, hidden_units_num, action_num)

    probs = jax.jit(actor_forward)(x, params)
    probs = jax.block_until_ready(probs)

    assert probs.shape == (batch, action_num)
    # approx=True reciprocal -> rows sum to 1 +- ~1e-3.
    assert jnp.allclose(jnp.sum(probs, axis=-1), 1.0, atol=5e-3)

    # Reference that matches the kernel's bf16/f32 mixed-precision path.
    ref_bf16 = _ref_forward(x, params, jnp.bfloat16)
    assert jnp.allclose(probs, ref_bf16, atol=5e-3)

    # Sanity check against the pure-f32 PyTorch-equivalent math.
    ref_f32 = _ref_forward(x, params, jnp.float32)
    assert jnp.allclose(probs, ref_f32, atol=3e-2)

    # TODO(synk): Categorical sampling / log_prob live outside the kernel; the
    # kernel emits the probs that fully parameterize the distribution.
    print("KERNEL_OK")
</pallas_src>

<mosaic_0001>
module attributes {stable_mosaic.version = 11 : i64} {
  func.func @actor_kernel(%arg0: i32, %arg1: memref<128x128xbf16, #tpu.memory_space<vmem>>, %arg2: memref<128x128xbf16, #tpu.memory_space<vmem>>, %arg3: memref<128x128xbf16, #tpu.memory_space<vmem>>, %arg4: memref<128x128xbf16, #tpu.memory_space<vmem>>, %arg5: memref<128x128xf32, #tpu.memory_space<vmem>>) attributes {dimension_semantics = [#tpu.dimension_semantics<parallel>], iteration_bounds = array<i64: 1>, scalar_prefetch = 0 : i64, scratch_operands = 0 : i64, tpu.core_type = #tpu.core_type<tc>, window_params = [{transform_indices = @transform_0, window_bounds = array<i64: 128, 128>}, {pipeline_mode = #tpu.pipeline_mode<synchronous>, transform_indices = @transform_1, window_bounds = array<i64: 128, 128>}, {pipeline_mode = #tpu.pipeline_mode<synchronous>, transform_indices = @transform_2, window_bounds = array<i64: 128, 128>}, {pipeline_mode = #tpu.pipeline_mode<synchronous>, transform_indices = @transform_3, window_bounds = array<i64: 128, 128>}, {transform_indices = @transform_4, window_bounds = array<i64: 128, 128>}]} {
    %c0 = arith.constant 0 : index
    %c0_0 = arith.constant 0 : index
    %0 = vector.load %arg1[%c0, %c0_0] : memref<128x128xbf16, #tpu.memory_space<vmem>>, vector<128x128xbf16>
    %c0_1 = arith.constant 0 : index
    %c0_2 = arith.constant 0 : index
    %1 = vector.load %arg2[%c0_1, %c0_2] : memref<128x128xbf16, #tpu.memory_space<vmem>>, vector<128x128xbf16>
    %cst = arith.constant dense<0.000000e+00> : vector<128x128xf32>
    %2 = tpu.matmul %0, %1, %cst {dimension_numbers = #tpu.dot_dimension_numbers<[1], [0], [0], [1], [0, 0, 1, 1], [], []>} : vector<128x128xbf16>, vector<128x128xbf16>, vector<128x128xf32> -> vector<128x128xf32>
    %cst_3 = arith.constant 0.000000e+00 : f32
    %3 = vector.broadcast %cst_3 : f32 to vector<128x128xf32>
    %4 = arith.maximumf %2, %3 : vector<128x128xf32>
    %5 = arith.truncf %4 : vector<128x128xf32> to vector<128x128xbf16>
    %c0_4 = arith.constant 0 : index
    %c0_5 = arith.constant 0 : index
    %6 = vector.load %arg3[%c0_4, %c0_5] : memref<128x128xbf16, #tpu.memory_space<vmem>>, vector<128x128xbf16>
    %cst_6 = arith.constant dense<0.000000e+00> : vector<128x128xf32>
    %7 = tpu.matmul %5, %6, %cst_6 {dimension_numbers = #tpu.dot_dimension_numbers<[1], [0], [0], [1], [0, 0, 1, 1], [], []>} : vector<128x128xbf16>, vector<128x128xbf16>, vector<128x128xf32> -> vector<128x128xf32>
    %cst_7 = arith.constant 0.000000e+00 : f32
    %8 = vector.broadcast %cst_7 : f32 to vector<128x128xf32>
    %9 = arith.maximumf %7, %8 : vector<128x128xf32>
    %10 = arith.truncf %9 : vector<128x128xf32> to vector<128x128xbf16>
    %c0_8 = arith.constant 0 : index
    %c0_9 = arith.constant 0 : index
    %11 = vector.load %arg4[%c0_8, %c0_9] : memref<128x128xbf16, #tpu.memory_space<vmem>>, vector<128x128xbf16>
    %cst_10 = arith.constant dense<0.000000e+00> : vector<128x128xf32>
    %12 = tpu.matmul %10, %11, %cst_10 {dimension_numbers = #tpu.dot_dimension_numbers<[1], [0], [0], [1], [0, 0, 1, 1], [], []>} : vector<128x128xbf16>, vector<128x128xbf16>, vector<128x128xf32> -> vector<128x128xf32>
    %cst_11 = arith.constant dense<0xFF800000> : vector<128xf32>
    %13 = vector.multi_reduction <maximumf>, %12, %cst_11 [1] : vector<128x128xf32> to vector<128xf32>
    %14 = vector.shape_cast %13 : vector<128xf32> to vector<128x1xf32>
    %15 = vector.broadcast %14 : vector<128x1xf32> to vector<128x128xf32>
    %16 = arith.subf %12, %15 : vector<128x128xf32>
    %17 = math.exp %16 : vector<128x128xf32>
    %cst_12 = arith.constant dense<0.000000e+00> : vector<128xf32>
    %18 = vector.multi_reduction <add>, %17, %cst_12 [1] : vector<128x128xf32> to vector<128xf32>
    %19 = vector.shape_cast %18 : vector<128xf32> to vector<128x1xf32>
    %20 = tpu.reciprocal %19 {approx = true} : vector<128x1xf32> -> vector<128x1xf32>
    %21 = vector.broadcast %20 : vector<128x1xf32> to vector<128x128xf32>
    %22 = arith.mulf %17, %21 : vector<128x128xf32>
    %c0_13 = arith.constant 0 : index
    %c0_14 = arith.constant 0 : index
    %23 = vector.load %arg5[%c0_13, %c0_14] : memref<128x128xf32, #tpu.memory_space<vmem>>, vector<128x128xf32>
    tpu.vector_store %arg5[%c0_13, %c0_14], %22 {strides = array<i32>} : memref<128x128xf32, #tpu.memory_space<vmem>>, vector<128x128xf32>,
    return
  }
  func.func @transform_0(%arg0: i32) -> (i32, i32) {
    %c0_i32 = arith.constant 0 : i32
    %c0_i32_0 = arith.constant 0 : i32
    return %arg0, %c0_i32 : i32, i32
  }
  func.func @transform_1(%arg0: i32) -> (i32, i32) {
    %c0_i32 = arith.constant 0 : i32
    %c0_i32_0 = arith.constant 0 : i32
    %c0_i32_1 = arith.constant 0 : i32
    return %c0_i32, %c0_i32_0 : i32, i32
  }
  func.func @transform_2(%arg0: i32) -> (i32, i32) {
    %c0_i32 = arith.constant 0 : i32
    %c0_i32_0 = arith.constant 0 : i32
    %c0_i32_1 = arith.constant 0 : i32
    return %c0_i32, %c0_i32_0 : i32, i32
  }
  func.func @transform_3(%arg0: i32) -> (i32, i32) {
    %c0_i32 = arith.constant 0 : i32
    %c0_i32_0 = arith.constant 0 : i32
    %c0_i32_1 = arith.constant 0 : i32
    return %c0_i32, %c0_i32_0 : i32, i32
  }
  func.func @transform_4(%arg0: i32) -> (i32, i32) {
    %c0_i32 = arith.constant 0 : i32
    %c0_i32_0 = arith.constant 0 : i32
    return %arg0, %c0_i32 : i32, i32
  }
}

</mosaic_0001>

<llo_original>
// kernel: actor_forward.1
$region0: #{actor_forward.1}
  #allocation0 [shape = 'u32[]', space=smem, size = 0x4, offset = 0x4, fixed_abs, tag = 'smem constant byte address 0x4 - core index']
  #allocation1 [shape = 'u32[144,128]{1,0:T(1,128)}', space=vmem, size = 0x12000, scoped, tag = 'internal scratch']
  %s0 = inlined_call_operand.vmem [shape: bf16[128,128], index: 0, kind: input, shape index: {}]
  %s1 = inlined_call_operand.vmem [shape: bf16[128,128], index: 1, kind: input, shape index: {}]
  %s2 = inlined_call_operand.vmem [shape: bf16[128,128], index: 2, kind: input, shape index: {}]
  %s3 = inlined_call_operand.vmem [shape: bf16[128,128], index: 3, kind: input, shape index: {}]
  %s4 = inlined_call_operand.vmem [shape: f32[128,128], index: 4, kind: output, shape index: {}]
  %s5 = sld [smem:[#allocation0]]
  $region26: #{actor_forward.1} parent=0
    _
  %s7 = ssub.s32 1, %s5
  %s8 = scalar_select 0, %s7, %s5
  // Predicated region
  $region2: #{actor_forward.1} parent=0 // pred_check
    _
  $region3: #{actor_forward.1} parent=0 // pred_check_branch
    %10 = sbr.rel (0) target = $region5
  $region4: #{actor_forward.1} parent=0 // pred_region
    _
  $region5: #{actor_forward.1} parent=0 // pred_fallthru
    _
  // Predicated region
  $region6: #{actor_forward.1} parent=0 // pred_check
    _
  $region7: #{actor_forward.1} parent=0 // pred_check_branch
    %12 = sbr.rel (0) target = $region9
  $region8: #{actor_forward.1} parent=0 // pred_region
    _
  $region9: #{actor_forward.1} parent=0 // pred_fallthru
    _
  // Predicated region
  $region10: #{actor_forward.1} parent=0 // pred_check
    _
  $region11: #{actor_forward.1} parent=0 // pred_check_branch
    %14 = sbr.rel (0) target = $region13
  $region12: #{actor_forward.1} parent=0 // pred_region
    _
  $region13: #{actor_forward.1} parent=0 // pred_fallthru
    _
  // Predicated region
  $region14: #{actor_forward.1} parent=0 // pred_check
    _
  $region15: #{actor_forward.1} parent=0 // pred_check_branch
    %16 = sbr.rel (0) target = $region17
  $region16: #{actor_forward.1} parent=0 // pred_region
    _
  $region17: #{actor_forward.1} parent=0 // pred_fallthru
    _
  %v18 = vld [vmem:[%s0] sm:$0xf]
  %v19 = vld [vmem:[%s0 + $0x4] sm:$0xf]
  %v20 = vld [vmem:[%s0 + $0x8] sm:$0xf]
  %v21 = vld [vmem:[%s0 + $0xc] sm:$0xf]
  %v22 = vld [vmem:[%s0 + $0x10] sm:$0xf]
  %v23 = vld [vmem:[%s0 + $0x14] sm:$0xf]
  %v24 = vld [vmem:[%s0 + $0x18] sm:$0xf]
  %v25 = vld [vmem:[%s0 + $0x1c] sm:$0xf]
  %v26 = vld [vmem:[%s0 + $0x20] sm:$0xf]
  %v27 = vld [vmem:[%s0 + $0x24] sm:$0xf]
  %v28 = vld [vmem:[%s0 + $0x28] sm:$0xf]
  %v29 = vld [vmem:[%s0 + $0x2c] sm:$0xf]
  %v30 = vld [vmem:[%s0 + $0x30] sm:$0xf]
  %v31 = vld [vmem:[%s0 + $0x34] sm:$0xf]
  %v32 = vld [vmem:[%s0 + $0x38] sm:$0xf]
  %v33 = vld [vmem:[%s0 + $0x3c] sm:$0xf]
  %v34 = vld [vmem:[%s1] sm:$0xf]
  %v35 = vld [vmem:[%s1 + $0x4] sm:$0xf]
  %v36 = vld [vmem:[%s1 + $0x8] sm:$0xf]
  %v37 = vld [vmem:[%s1 + $0xc] sm:$0xf]
  %v38 = vld [vmem:[%s1 + $0x10] sm:$0xf]
  %v39 = vld [vmem:[%s1 + $0x14] sm:$0xf]
  %v40 = vld [vmem:[%s1 + $0x18] sm:$0xf]
  %v41 = vld [vmem:[%s1 + $0x1c] sm:$0xf]
  %v42 = vld [vmem:[%s1 + $0x20] sm:$0xf]
  %v43 = vld [vmem:[%s1 + $0x24] sm:$0xf]
  %v44 = vld [vmem:[%s1 + $0x28] sm:$0xf]
  %v45 = vld [vmem:[%s1 + $0x2c] sm:$0xf]
  %v46 = vld [vmem:[%s1 + $0x30] sm:$0xf]
  %v47 = vld [vmem:[%s1 + $0x34] sm:$0xf]
  %v48 = vld [vmem:[%s1 + $0x38] sm:$0xf]
  %v49 = vld [vmem:[%s1 + $0x3c] sm:$0xf]
  %v66 = vunpack.c.l.b16 %v18
  %v67 = vunpack.c.l.b16 %v19
  %v68 = vunpack.c.l.b16 %v20
  %v69 = vunpack.c.l.b16 %v21
  %v70 = vunpack.c.l.b16 %v22
  %v71 = vunpack.c.l.b16 %v23
  %v72 = vunpack.c.l.b16 %v24
  %v73 = vunpack.c.l.b16 %v25
  %v74 = vunpack.c.l.b16 %v26
  %v75 = vunpack.c.l.b16 %v27
  %v76 = vunpack.c.l.b16 %v28
  %v77 = vunpack.c.l.b16 %v29
  %v78 = vunpack.c.l.b16 %v30
  %v79 = vunpack.c.l.b16 %v31
  %v80 = vunpack.c.l.b16 %v32
  %v81 = vunpack.c.l.b16 %v33
  %v82 = vpack.c.b16 %v67, %v66
  %v83 = vpack.c.b16 %v69, %v68
  %v84 = vpack.c.b16 %v71, %v70
  %v85 = vpack.c.b16 %v73, %v72
  %v86 = vpack.c.b16 %v75, %v74
  %v87 = vpack.c.b16 %v77, %v76
  %v88 = vpack.c.b16 %v79, %v78
  %v89 = vpack.c.b16 %v81, %v80
  %v114 = vunpack.c.l.b16 %v34
  %v115 = vunpack.c.l.b16 %v35
  %v116 = vunpack.c.l.b16 %v36
  %v117 = vunpack.c.l.b16 %v37
  %v118 = vunpack.c.l.b16 %v38
  %v119 = vunpack.c.l.b16 %v39
  %v120 = vunpack.c.l.b16 %v40
  %v121 = vunpack.c.l.b16 %v41
  %v122 = vunpack.c.l.b16 %v42
  %v123 = vunpack.c.l.b16 %v43
  %v124 = vunpack.c.l.b16 %v44
  %v125 = vunpack.c.l.b16 %v45
  %v126 = vunpack.c.l.b16 %v46
  %v127 = vunpack.c.l.b16 %v47
  %v128 = vunpack.c.l.b16 %v48
  %v129 = vunpack.c.l.b16 %v49
  %v130 = vpack.c.b16 %v115, %v114
  %v131 = vpack.c.b16 %v117, %v116
  %v132 = vpack.c.b16 %v119, %v118
  %v133 = vpack.c.b16 %v121, %v120
  %v134 = vpack.c.b16 %v123, %v122
  %v135 = vpack.c.b16 %v125, %v124
  %v136 = vpack.c.b16 %v127, %v126
  %v137 = vpack.c.b16 %v129, %v128
  %146 = vmatprep.subr.bf16.mxu0 0
  %147 = vmatpush1.bf16.msra.mxu0 %v130
  %148 = vmatprep.subr.bf16.mxu0 0
  %149 = vmatpush1.bf16.msra.mxu0 %v131
  %150 = vmatprep.subr.bf16.mxu0 0
  %151 = vmatpush1.bf16.msra.mxu0 %v132
  %152 = vmatprep.subr.bf16.mxu0 0
  %153 = vmatpush1.bf16.msra.mxu0 %v133
  %154 = vmatprep.subr.bf16.mxu0 0
  %155 = vmatpush1.bf16.msra.mxu0 %v134
  %156 = vmatprep.subr.bf16.mxu0 0
  %157 = vmatpush1.bf16.msra.mxu0 %v135
  %158 = vmatprep.subr.bf16.mxu0 0
  %159 = vmatpush1.bf16.msra.mxu0 %v136
  %160 = vmatprep.subr.bf16.mxu0 0
  %161 = vmatpush1.bf16.msra.mxu0 %v137
  %162 = vmatprep.subr.bf16.mxu0 0
  %163 = vmatpush1.bf16.msra.mxu0 0
  %164 = vmatprep.subr.bf16.mxu0 0
  %165 = vmatpush1.bf16.msra.mxu0 0
  %166 = vmatprep.subr.bf16.mxu0 0
  %167 = vmatpush1.bf16.msra.mxu0 0
  %168 = vmatprep.subr.bf16.mxu0 0
  %169 = vmatpush1.bf16.msra.mxu0 0
  %170 = vmatprep.subr.bf16.mxu0 0
  %171 = vmatpush1.bf16.msra.mxu0 0
  %172 = vmatprep.subr.bf16.mxu0 0
  %173 = vmatpush1.bf16.msra.mxu0 0
  %174 = vmatprep.subr.bf16.mxu0 0
  %175 = vmatpush1.bf16.msra.mxu0 0
  %176 = vmatprep.subr.bf16.mxu0 0
  %177 = vmatpush1.bf16.msra.mxu0 0
  %178 = vmatprep.mubr.bf16.mxu0 0
  %179 = vmatmul.mubr.bf16.gmra.mrb[0].mxu0 %v82
  %v180 = vpop.f32.mrb[0].mxu0
  %v181 = vadd.f32 0.0, %v180
  %v182 = vpop.f32.mrb[0].mxu0
  %v183 = vpop.f32.mrb[0].mxu0
  %v184 = vadd.f32 0.0, %v183
  %v185 = vpop.f32.mrb[0].mxu0
  %186 = vmatprep.mubr.bf16.mxu0 0
  %187 = vmatmul.mubr.bf16.gmra.mrb[0].mxu0 %v83
  %v188 = vpop.f32.mrb[0].mxu0
  %v189 = vadd.f32 0.0, %v188
  %v190 = vpop.f32.mrb[0].mxu0
  %v191 = vpop.f32.mrb[0].mxu0
  %v192 = vadd.f32 0.0, %v191
  %v193 = vpop.f32.mrb[0].mxu0
  %194 = vmatprep.mubr.bf16.mxu0 0
  %195 = vmatmul.mubr.bf16.gmra.mrb[0].mxu0 %v84
  %v196 = vpop.f32.mrb[0].mxu0
  %v197 = vadd.f32 0.0, %v196
  %v198 = vpop.f32.mrb[0].mxu0
  %v199 = vpop.f32.mrb[0].mxu0
  %v200 = vadd.f32 0.0, %v199
  %v201 = vpop.f32.mrb[0].mxu0
  %202 = vmatprep.mubr.bf16.mxu0 0
  %203 = vmatmul.mubr.bf16.gmra.mrb[0].mxu0 %v85
  %v204 = vpop.f32.mrb[0].mxu0
  %v205 = vadd.f32 0.0, %v204
  %v206 = vpop.f32.mrb[0].mxu0
  %v207 = vpop.f32.mrb[0].mxu0
  %v208 = vadd.f32 0.0, %v207
  %v209 = vpop.f32.mrb[0].mxu0
  %210 = vmatprep.mubr.bf16.mxu0 0
  %211 = vmatmul.mubr.bf16.gmra.mrb[0].mxu0 %v86
  %v212 = vpop.f32.mrb[0].mxu0
  %v213 = vadd.f32 0.0, %v212
  %v214 = vpop.f32.mrb[0].mxu0
  %v215 = vpop.f32.mrb[0].mxu0
  %v216 = vadd.f32 0.0, %v215
  %v217 = vpop.f32.mrb[0].mxu0
  %218 = vmatprep.mubr.bf16.mxu0 0
  %219 = vmatmul.mubr.bf16.gmra.mrb[0].mxu0 %v87
  %v220 = vpop.f32.mrb[0].mxu0
  %v221 = vadd.f32 0.0, %v220
  %v222 = vpop.f32.mrb[0].mxu0
  %v223 = vpop.f32.mrb[0].mxu0
  %v224 = vadd.f32 0.0, %v223
  %v225 = vpop.f32.mrb[0].mxu0
  %226 = vmatprep.mubr.bf16.mxu0 0
  %227 = vmatmul.mubr.bf16.gmra.mrb[0].mxu0 %v88
  %v228 = vpop.f32.mrb[0].mxu0
  %v229 = vadd.f32 0.0, %v228
  %v230 = vpop.f32.mrb[0].mxu0
  %v231 = vpop.f32.mrb[0].mxu0
  %v232 = vadd.f32 0.0, %v231
  %v233 = vpop.f32.mrb[0].mxu0
  %234 = vmatprep.mubr.bf16.mxu0 0
  %235 = vmatmul.mubr.bf16.gmra.mrb[0].mxu0 %v89
  %v236 = vpop.f32.mrb[0].mxu0
  %v237 = vadd.f32 0.0, %v236
  %v238 = vpop.f32.mrb[0].mxu0
  %v239 = vpop.f32.mrb[0].mxu0
  %v240 = vadd.f32 0.0, %v239
  %v241 = vpop.f32.mrb[0].mxu0
  %242 = vdwg.mxu0
  %v243 = vmax.f32 %v181, 0.0
  %v244 = vmax.f32 %v184, 0.0
  %v245 = vmax.f32 %v189, 0.0
  %v246 = vmax.f32 %v192, 0.0
  %v247 = vmax.f32 %v197, 0.0
  %v248 = vmax.f32 %v200, 0.0
  %v249 = vmax.f32 %v205, 0.0
  %v250 = vmax.f32 %v208, 0.0
  %v251 = vmax.f32 %v213, 0.0
  %v252 = vmax.f32 %v216, 0.0
  %v253 = vmax.f32 %v221, 0.0
  %v254 = vmax.f32 %v224, 0.0
  %v255 = vmax.f32 %v229, 0.0
  %v256 = vmax.f32 %v232, 0.0
  %v257 = vmax.f32 %v237, 0.0
  %v258 = vmax.f32 %v240, 0.0
  %v259 = vpack.c.bf16 %v244, %v243
  %v260 = vpack.c.bf16 %v246, %v245
  %v261 = vpack.c.bf16 %v248, %v247
  %v262 = vpack.c.bf16 %v250, %v249
  %v263 = vpack.c.bf16 %v252, %v251
  %v264 = vpack.c.bf16 %v254, %v253
  %v265 = vpack.c.bf16 %v256, %v255
  %v266 = vpack.c.bf16 %v258, %v257
  %v267 = vld [vmem:[%s2] sm:$0xf]
  %v268 = vld [vmem:[%s2 + $0x4] sm:$0xf]
  %v269 = vld [vmem:[%s2 + $0x8] sm:$0xf]
  %v270 = vld [vmem:[%s2 + $0xc] sm:$0xf]
  %v271 = vld [vmem:[%s2 + $0x10] sm:$0xf]
  %v272 = vld [vmem:[%s2 + $0x14] sm:$0xf]
  %v273 = vld [vmem:[%s2 + $0x18] sm:$0xf]
  %v274 = vld [vmem:[%s2 + $0x1c] sm:$0xf]
  %v275 = vld [vmem:[%s2 + $0x20] sm:$0xf]
  %v276 = vld [vmem:[%s2 + $0x24] sm:$0xf]
  %v277 = vld [vmem:[%s2 + $0x28] sm:$0xf]
  %v278 = vld [vmem:[%s2 + $0x2c] sm:$0xf]
  %v279 = vld [vmem:[%s2 + $0x30] sm:$0xf]
  %v280 = vld [vmem:[%s2 + $0x34] sm:$0xf]
  %v281 = vld [vmem:[%s2 + $0x38] sm:$0xf]
  %v282 = vld [vmem:[%s2 + $0x3c] sm:$0xf]
  %v299 = vunpack.c.l.b16 %v267
  %v300 = vunpack.c.l.b16 %v268
  %v301 = vunpack.c.l.b16 %v269
  %v302 = vunpack.c.l.b16 %v270
  %v303 = vunpack.c.l.b16 %v271
  %v304 = vunpack.c.l.b16 %v272
  %v305 = vunpack.c.l.b16 %v273
  %v306 = vunpack.c.l.b16 %v274
  %v307 = vunpack.c.l.b16 %v275
  %v308 = vunpack.c.l.b16 %v276
  %v309 = vunpack.c.l.b16 %v277
  %v310 = vunpack.c.l.b16 %v278
  %v311 = vunpack.c.l.b16 %v279
  %v312 = vunpack.c.l.b16 %v280
  %v313 = vunpack.c.l.b16 %v281
  %v314 = vunpack.c.l.b16 %v282
  %v315 = vpack.c.b16 %v300, %v299
  %v316 = vpack.c.b16 %v302, %v301
  %v317 = vpack.c.b16 %v304, %v303
  %v318 = vpack.c.b16 %v306, %v305
  %v319 = vpack.c.b16 %v308, %v307
  %v320 = vpack.c.b16 %v310, %v309
  %v321 = vpack.c.b16 %v312, %v311
  %v322 = vpack.c.b16 %v314, %v313
  %331 = vmatprep.subr.bf16.mxu0 0
  %332 = vmatpush1.bf16.msra.mxu0 %v315
  %333 = vmatprep.subr.bf16.mxu0 0
  %334 = vmatpush1.bf16.msra.mxu0 %v316
  %335 = vmatprep.subr.bf16.mxu0 0
  %336 = vmatpush1.bf16.msra.mxu0 %v317
  %337 = vmatprep.subr.bf16.mxu0 0
  %338 = vmatpush1.bf16.msra.mxu0 %v318
  %339 = vmatprep.subr.bf16.mxu0 0
  %340 = vmatpush1.bf16.msra.mxu0 %v319
  %341 = vmatprep.subr.bf16.mxu0 0
  %342 = vmatpush1.bf16.msra.mxu0 %v320
  %343 = vmatprep.subr.bf16.mxu0 0
  %344 = vmatpush1.bf16.msra.mxu0 %v321
  %345 = vmatprep.subr.bf16.mxu0 0
  %346 = vmatpush1.bf16.msra.mxu0 %v322
  %347 = vmatprep.subr.bf16.mxu0 0
  %348 = vmatpush1.bf16.msra.mxu0 0
  %349 = vmatprep.subr.bf16.mxu0 0
  %350 = vmatpush1.bf16.msra.mxu0 0
  %351 = vmatprep.subr.bf16.mxu0 0
  %352 = vmatpush1.bf16.msra.mxu0 0
  %353 = vmatprep.subr.bf16.mxu0 0
  %354 = vmatpush1.bf16.msra.mxu0 0
  %355 = vmatprep.subr.bf16.mxu0 0
  %356 = vmatpush1.bf16.msra.mxu0 0
  %357 = vmatprep.subr.bf16.mxu0 0
  %358 = vmatpush1.bf16.msra.mxu0 0
  %359 = vmatprep.subr.bf16.mxu0 0
  %360 = vmatpush1.bf16.msra.mxu0 0
  %361 = vmatprep.subr.bf16.mxu0 0
  %362 = vmatpush1.bf16.msra.mxu0 0
  %363 = vmatprep.mubr.bf16.mxu0 0
  %364 = vmatmul.mubr.bf16.gmra.mrb[0].mxu0 %v259
  %v365 = vpop.f32.mrb[0].mxu0
  %v366 = vadd.f32 0.0, %v365
  %v367 = vpop.f32.mrb[0].mxu0
  %v368 = vpop.f32.mrb[0].mxu0
  %v369 = vadd.f32 0.0, %v368
  %v370 = vpop.f32.mrb[0].mxu0
  %371 = vmatprep.mubr.bf16.mxu0 0
  %372 = vmatmul.mubr.bf16.gmra.mrb[0].mxu0 %v260
  %v373 = vpop.f32.mrb[0].mxu0
  %v374 = vadd.f32 0.0, %v373
  %v375 = vpop.f32.mrb[0].mxu0
  %v376 = vpop.f32.mrb[0].mxu0
  %v377 = vadd.f32 0.0, %v376
  %v378 = vpop.f32.mrb[0].mxu0
  %379 = vmatprep.mubr.bf16.mxu0 0
  %380 = vmatmul.mubr.bf16.gmra.mrb[0].mxu0 %v261
  %v381 = vpop.f32.mrb[0].mxu0
  %v382 = vadd.f32 0.0, %v381
  %v383 = vpop.f32.mrb[0].mxu0
  %v384 = vpop.f32.mrb[0].mxu0
  %v385 = vadd.f32 0.0, %v384
  %v386 = vpop.f32.mrb[0].mxu0
  %387 = vmatprep.mubr.bf16.mxu0 0
  %388 = vmatmul.mubr.bf16.gmra.mrb[0].mxu0 %v262
  %v389 = vpop.f32.mrb[0].mxu0
  %v390 = vadd.f32 0.0, %v389
  %v391 = vpop.f32.mrb[0].mxu0
  %v392 = vpop.f32.mrb[0].mxu0
  %v393 = vadd.f32 0.0, %v392
  %v394 = vpop.f32.mrb[0].mxu0
  %395 = vmatprep.mubr.bf16.mxu0 0
  %396 = vmatmul.mubr.bf16.gmra.mrb[0].mxu0 %v263
  %v397 = vpop.f32.mrb[0].mxu0
  %v398 = vadd.f32 0.0, %v397
  %v399 = vpop.f32.mrb[0].mxu0
  %v400 = vpop.f32.mrb[0].mxu0
  %v401 = vadd.f32 0.0, %v400
  %v402 = vpop.f32.mrb[0].mxu0
  %403 = vmatprep.mubr.bf16.mxu0 0
  %404 = vmatmul.mubr.bf16.gmra.mrb[0].mxu0 %v264
  %v405 = vpop.f32.mrb[0].mxu0
  %v406 = vadd.f32 0.0, %v405
  %v407 = vpop.f32.mrb[0].mxu0
  %v408 = vpop.f32.mrb[0].mxu0
  %v409 = vadd.f32 0.0, %v408
  %v410 = vpop.f32.mrb[0].mxu0
  %411 = vmatprep.mubr.bf16.mxu0 0
  %412 = vmatmul.mubr.bf16.gmra.mrb[0].mxu0 %v265
  %v413 = vpop.f32.mrb[0].mxu0
  %v414 = vadd.f32 0.0, %v413
  %v415 = vpop.f32.mrb[0].mxu0
  %v416 = vpop.f32.mrb[0].mxu0
  %v417 = vadd.f32 0.0, %v416
  %v418 = vpop.f32.mrb[0].mxu0
  %419 = vmatprep.mubr.bf16.mxu0 0
  %420 = vmatmul.mubr.bf16.gmra.mrb[0].mxu0 %v266
  %v421 = vpop.f32.mrb[0].mxu0
  %v422 = vadd.f32 0.0, %v421
  %v423 = vpop.f32.mrb[0].mxu0
  %v424 = vpop.f32.mrb[0].mxu0
  %v425 = vadd.f32 0.0, %v424
  %v426 = vpop.f32.mrb[0].mxu0
  %427 = vdwg.mxu0
  %v428 = vmax.f32 %v366, 0.0
  %v429 = vmax.f32 %v369, 0.0
  %v430 = vmax.f32 %v374, 0.0
  %v431 = vmax.f32 %v377, 0.0
  %v432 = vmax.f32 %v382, 0.0
  %v433 = vmax.f32 %v385, 0.0
  %v434 = vmax.f32 %v390, 0.0
  %v435 = vmax.f32 %v393, 0.0
  %v436 = vmax.f32 %v398, 0.0
  %v437 = vmax.f32 %v401, 0.0
  %v438 = vmax.f32 %v406, 0.0
  %v439 = vmax.f32 %v409, 0.0
  %v440 = vmax.f32 %v414, 0.0
  %v441 = vmax.f32 %v417, 0.0
  %v442 = vmax.f32 %v422, 0.0
  %v443 = vmax.f32 %v425, 0.0
  %v444 = vpack.c.bf16 %v429, %v428
  %v445 = vpack.c.bf16 %v431, %v430
  %v446 = vpack.c.bf16 %v433, %v432
  %v447 = vpack.c.bf16 %v435, %v434
  %v448 = vpack.c.bf16 %v437, %v436
  %v449 = vpack.c.bf16 %v439, %v438
  %v450 = vpack.c.bf16 %v441, %v440
  %v451 = vpack.c.bf16 %v443, %v442
  %v452 = vld [vmem:[%s3] sm:$0xf]
  %v453 = vld [vmem:[%s3 + $0x4] sm:$0xf]
  %v454 = vld [vmem:[%s3 + $0x8] sm:$0xf]
  %v455 = vld [vmem:[%s3 + $0xc] sm:$0xf]
  %v456 = vld [vmem:[%s3 + $0x10] sm:$0xf]
  %v457 = vld [vmem:[%s3 + $0x14] sm:$0xf]
  %v458 = vld [vmem:[%s3 + $0x18] sm:$0xf]
  %v459 = vld [vmem:[%s3 + $0x1c] sm:$0xf]
  %v460 = vld [vmem:[%s3 + $0x20] sm:$0xf]
  %v461 = vld [vmem:[%s3 + $0x24] sm:$0xf]
  %v462 = vld [vmem:[%s3 + $0x28] sm:$0xf]
  %v463 = vld [vmem:[%s3 + $0x2c] sm:$0xf]
  %v464 = vld [vmem:[%s3 + $0x30] sm:$0xf]
  %v465 = vld [vmem:[%s3 + $0x34] sm:$0xf]
  %v466 = vld [vmem:[%s3 + $0x38] sm:$0xf]
  %v467 = vld [vmem:[%s3 + $0x3c] sm:$0xf]
  %v484 = vunpack.c.l.b16 %v452
  %v485 = vunpack.c.l.b16 %v453
  %v486 = vunpack.c.l.b16 %v454
  %v487 = vunpack.c.l.b16 %v455
  %v488 = vunpack.c.l.b16 %v456
  %v489 = vunpack.c.l.b16 %v457
  %v490 = vunpack.c.l.b16 %v458
  %v491 = vunpack.c.l.b16 %v459
  %v492 = vunpack.c.l.b16 %v460
  %v493 = vunpack.c.l.b16 %v461
  %v494 = vunpack.c.l.b16 %v462
  %v495 = vunpack.c.l.b16 %v463
  %v496 = vunpack.c.l.b16 %v464
  %v497 = vunpack.c.l.b16 %v465
  %v498 = vunpack.c.l.b16 %v466
  %v499 = vunpack.c.l.b16 %v467
  %v500 = vpack.c.b16 %v485, %v484
  %v501 = vpack.c.b16 %v487, %v486
  %v502 = vpack.c.b16 %v489, %v488
  %v503 = vpack.c.b16 %v491, %v490
  %v504 = vpack.c.b16 %v493, %v492
  %v505 = vpack.c.b16 %v495, %v494
  %v506 = vpack.c.b16 %v497, %v496
  %v507 = vpack.c.b16 %v499, %v498
  %516 = vmatprep.subr.bf16.mxu0 0
  %517 = vmatpush1.bf16.msra.mxu0 %v500
  %518 = vmatprep.subr.bf16.mxu0 0
  %519 = vmatpush1.bf16.msra.mxu0 %v501
  %520 = vmatprep.subr.bf16.mxu0 0
  %521 = vmatpush1.bf16.msra.mxu0 %v502
  %522 = vmatprep.subr.bf16.mxu0 0
  %523 = vmatpush1.bf16.msra.mxu0 %v503
  %524 = vmatprep.subr.bf16.mxu0 0
  %525 = vmatpush1.bf16.msra.mxu0 %v504
  %526 = vmatprep.subr.bf16.mxu0 0
  %527 = vmatpush1.bf16.msra.mxu0 %v505
  %528 = vmatprep.subr.bf16.mxu0 0
  %529 = vmatpush1.bf16.msra.mxu0 %v506
  %530 = vmatprep.subr.bf16.mxu0 0
  %531 = vmatpush1.bf16.msra.mxu0 %v507
  %532 = vmatprep.subr.bf16.mxu0 0
  %533 = vmatpush1.bf16.msra.mxu0 0
  %534 = vmatprep.subr.bf16.mxu0 0
  %535 = vmatpush1.bf16.msra.mxu0 0
  %536 = vmatprep.subr.bf16.mxu0 0
  %537 = vmatpush1.bf16.msra.mxu0 0
  %538 = vmatprep.subr.bf16.mxu0 0
  %539 = vmatpush1.bf16.msra.mxu0 0
  %540 = vmatprep.subr.bf16.mxu0 0
  %541 = vmatpush1.bf16.msra.mxu0 0
  %542 = vmatprep.subr.bf16.mxu0 0
  %543 = vmatpush1.bf16.msra.mxu0 0
  %544 = vmatprep.subr.bf16.mxu0 0
  %545 = vmatpush1.bf16.msra.mxu0 0
  %546 = vmatprep.subr.bf16.mxu0 0
  %547 = vmatpush1.bf16.msra.mxu0 0
  %548 = vmatprep.mubr.bf16.mxu0 0
  %549 = vmatmul.mubr.bf16.gmra.mrb[0].mxu0 %v444
  %v550 = vpop.f32.mrb[0].mxu0
  %v551 = vadd.f32 0.0, %v550
  %v552 = vpop.f32.mrb[0].mxu0
  %v553 = vpop.f32.mrb[0].mxu0
  %v554 = vadd.f32 0.0, %v553
  %v555 = vpop.f32.mrb[0].mxu0
  %556 = vmatprep.mubr.bf16.mxu0 0
  %557 = vmatmul.mubr.bf16.gmra.mrb[0].mxu0 %v445
  %v558 = vpop.f32.mrb[0].mxu0
  %v559 = vadd.f32 0.0, %v558
  %v560 = vpop.f32.mrb[0].mxu0
  %v561 = vpop.f32.mrb[0].mxu0
  %v562 = vadd.f32 0.0, %v561
  %v563 = vpop.f32.mrb[0].mxu0
  %564 = vmatprep.mubr.bf16.mxu0 0
  %565 = vmatmul.mubr.bf16.gmra.mrb[0].mxu0 %v446
  %v566 = vpop.f32.mrb[0].mxu0
  %v567 = vadd.f32 0.0, %v566
  %v568 = vpop.f32.mrb[0].mxu0
  %v569 = vpop.f32.mrb[0].mxu0
  %v570 = vadd.f32 0.0, %v569
  %v571 = vpop.f32.mrb[0].mxu0
  %572 = vmatprep.mubr.bf16.mxu0 0
  %573 = vmatmul.mubr.bf16.gmra.mrb[0].mxu0 %v447
  %v574 = vpop.f32.mrb[0].mxu0
  %v575 = vadd.f32 0.0, %v574
  %v576 = vpop.f32.mrb[0].mxu0
  %v577 = vpop.f32.mrb[0].mxu0
  %v578 = vadd.f32 0.0, %v577
  %v579 = vpop.f32.mrb[0].mxu0
  %580 = vmatprep.mubr.bf16.mxu0 0
  %581 = vmatmul.mubr.bf16.gmra.mrb[0].mxu0 %v448
  %v582 = vpop.f32.mrb[0].mxu0
  %v583 = vadd.f32 0.0, %v582
  %v584 = vpop.f32.mrb[0].mxu0
  %v585 = vpop.f32.mrb[0].mxu0
  %v586 = vadd.f32 0.0, %v585
  %v587 = vpop.f32.mrb[0].mxu0
  %588 = vmatprep.mubr.bf16.mxu0 0
  %589 = vmatmul.mubr.bf16.gmra.mrb[0].mxu0 %v449
  %v590 = vpop.f32.mrb[0].mxu0
  %v591 = vadd.f32 0.0, %v590
  %v592 = vpop.f32.mrb[0].mxu0
  %v593 = vpop.f32.mrb[0].mxu0
  %v594 = vadd.f32 0.0, %v593
  %v595 = vpop.f32.mrb[0].mxu0
  %596 = vmatprep.mubr.bf16.mxu0 0
  %597 = vmatmul.mubr.bf16.gmra.mrb[0].mxu0 %v450
  %v598 = vpop.f32.mrb[0].mxu0
  %v599 = vadd.f32 0.0, %v598
  %v600 = vpop.f32.mrb[0].mxu0
  %v601 = vpop.f32.mrb[0].mxu0
  %v602 = vadd.f32 0.0, %v601
  %v603 = vpop.f32.mrb[0].mxu0
  %604 = vmatprep.mubr.bf16.mxu0 0
  %605 = vmatmul.mubr.bf16.gmra.mrb[0].mxu0 %v451
  %v606 = vpop.f32.mrb[0].mxu0
  %v607 = vadd.f32 0.0, %v606
  %v608 = vpop.f32.mrb[0].mxu0
  %v609 = vpop.f32.mrb[0].mxu0
  %v610 = vadd.f32 0.0, %v609
  %v611 = vpop.f32.mrb[0].mxu0
  %612 = vdwg.mxu0
  %613 = vmax.xlane.f32.xlu0 %v551
  %v614 = vpop.xlane.xlu0 %613
  %615 = vmax.xlane.f32.xlu0 %v554
  %v616 = vpop.xlane.xlu0 %615
  %617 = vmax.xlane.f32.xlu0 %v559
  %v618 = vpop.xlane.xlu0 %617
  %619 = vmax.xlane.f32.xlu0 %v562
  %v620 = vpop.xlane.xlu0 %619
  %621 = vmax.xlane.f32.xlu0 %v567
  %v622 = vpop.xlane.xlu0 %621
  %623 = vmax.xlane.f32.xlu0 %v570
  %v624 = vpop.xlane.xlu0 %623
  %625 = vmax.xlane.f32.xlu0 %v575
  %v626 = vpop.xlane.xlu0 %625
  %627 = vmax.xlane.f32.xlu0 %v578
  %v628 = vpop.xlane.xlu0 %627
  %629 = vmax.xlane.f32.xlu0 %v583
  %v630 = vpop.xlane.xlu0 %629
  %631 = vmax.xlane.f32.xlu0 %v586
  %v632 = vpop.xlane.xlu0 %631
  %633 = vmax.xlane.f32.xlu0 %v591
  %v634 = vpop.xlane.xlu0 %633
  %635 = vmax.xlane.f32.xlu0 %v594
  %v636 = vpop.xlane.xlu0 %635
  %637 = vmax.xlane.f32.xlu0 %v599
  %v638 = vpop.xlane.xlu0 %637
  %639 = vmax.xlane.f32.xlu0 %v602
  %v640 = vpop.xlane.xlu0 %639
  %641 = vmax.xlane.f32.xlu0 %v607
  %v642 = vpop.xlane.xlu0 %641
  %643 = vmax.xlane.f32.xlu0 %v610
  %v644 = vpop.xlane.xlu0 %643
  %v645 = vsub.f32 %v551, %v614
  %v646 = vsub.f32 %v554, %v616
  %v647 = vsub.f32 %v559, %v618
  %v648 = vsub.f32 %v562, %v620
  %v649 = vsub.f32 %v567, %v622
  %v650 = vsub.f32 %v570, %v624
  %v651 = vsub.f32 %v575, %v626
  %v652 = vsub.f32 %v578, %v628
  %v653 = vsub.f32 %v583, %v630
  %v654 = vsub.f32 %v586, %v632
  %v655 = vsub.f32 %v591, %v634
  %v656 = vsub.f32 %v594, %v636
  %v657 = vsub.f32 %v599, %v638
  %v658 = vsub.f32 %v602, %v640
  %v659 = vsub.f32 %v607, %v642
  %v660 = vsub.f32 %v610, %v644
  %v661 = vmul.f32 %v645, 1.442695
  %v662 = vpow.pop %v661
  %v663 = vmul.f32 %v646, 1.442695
  %v664 = vpow.pop %v663
  %v665 = vmul.f32 %v647, 1.442695
  %v666 = vpow.pop %v665
  %v667 = vmul.f32 %v648, 1.442695
  %v668 = vpow.pop %v667
  %v669 = vmul.f32 %v649, 1.442695
  %v670 = vpow.pop %v669
  %v671 = vmul.f32 %v650, 1.442695
  %v672 = vpow.pop %v671
  %v673 = vmul.f32 %v651, 1.442695
  %v674 = vpow.pop %v673
  %v675 = vmul.f32 %v652, 1.442695
  %v676 = vpow.pop %v675
  %v677 = vmul.f32 %v653, 1.442695
  %v678 = vpow.pop %v677
  %v679 = vmul.f32 %v654, 1.442695
  %v680 = vpow.pop %v679
  %v681 = vmul.f32 %v655, 1.442695
  %v682 = vpow.pop %v681
  %v683 = vmul.f32 %v656, 1.442695
  %v684 = vpow.pop %v683
  %v685 = vmul.f32 %v657, 1.442695
  %v686 = vpow.pop %v685
  %v687 = vmul.f32 %v658, 1.442695
  %v688 = vpow.pop %v687
  %v689 = vmul.f32 %v659, 1.442695
  %v690 = vpow.pop %v689
  %v691 = vmul.f32 %v660, 1.442695
  %v692 = vpow.pop %v691
  %693 = vadd.xlane.f32.xlu0 %v662
  %v694 = vpop.xlane.xlu0 %693
  %695 = vadd.xlane.f32.xlu0 %v664
  %v696 = vpop.xlane.xlu0 %695
  %697 = vadd.xlane.f32.xlu0 %v666
  %v698 = vpop.xlane.xlu0 %697
  %699 = vadd.xlane.f32.xlu0 %v668
  %v700 = vpop.xlane.xlu0 %699
  %701 = vadd.xlane.f32.xlu0 %v670
  %v702 = vpop.xlane.xlu0 %701
  %703 = vadd.xlane.f32.xlu0 %v672
  %v704 = vpop.xlane.xlu0 %703
  %705 = vadd.xlane.f32.xlu0 %v674
  %v706 = vpop.xlane.xlu0 %705
  %707 = vadd.xlane.f32.xlu0 %v676
  %v708 = vpop.xlane.xlu0 %707
  %709 = vadd.xlane.f32.xlu0 %v678
  %v710 = vpop.xlane.xlu0 %709
  %711 = vadd.xlane.f32.xlu0 %v680
  %v712 = vpop.xlane.xlu0 %711
  %713 = vadd.xlane.f32.xlu0 %v682
  %v714 = vpop.xlane.xlu0 %713
  %715 = vadd.xlane.f32.xlu0 %v684
  %v716 = vpop.xlane.xlu0 %715
  %717 = vadd.xlane.f32.xlu0 %v686
  %v718 = vpop.xlane.xlu0 %717
  %719 = vadd.xlane.f32.xlu0 %v688
  %v720 = vpop.xlane.xlu0 %719
  %721 = vadd.xlane.f32.xlu0 %v690
  %v722 = vpop.xlane.xlu0 %721
  %723 = vadd.xlane.f32.xlu0 %v692
  %v724 = vpop.xlane.xlu0 %723
  %v725 = vrcp.pop %v694
  %v726 = vrcp.pop %v696
  %v727 = vrcp.pop %v698
  %v728 = vrcp.pop %v700
  %v729 = vrcp.pop %v702
  %v730 = vrcp.pop %v704
  %v731 = vrcp.pop %v706
  %v732 = vrcp.pop %v708
  %v733 = vrcp.pop %v710
  %v734 = vrcp.pop %v712
  %v735 = vrcp.pop %v714
  %v736 = vrcp.pop %v716
  %v737 = vrcp.pop %v718
  %v738 = vrcp.pop %v720
  %v739 = vrcp.pop %v722
  %v740 = vrcp.pop %v724
  %v741 = vmul.f32 %v662, %v725
  %v742 = vmul.f32 %v664, %v726
  %v743 = vmul.f32 %v666, %v727
  %v744 = vmul.f32 %v668, %v728
  %v745 = vmul.f32 %v670, %v729
  %v746 = vmul.f32 %v672, %v730
  %v747 = vmul.f32 %v674, %v731
  %v748 = vmul.f32 %v676, %v732
  %v749 = vmul.f32 %v678, %v733
  %v750 = vmul.f32 %v680, %v734
  %v751 = vmul.f32 %v682, %v735
  %v752 = vmul.f32 %v684, %v736
  %v753 = vmul.f32 %v686, %v737
  %v754 = vmul.f32 %v688, %v738
  %v755 = vmul.f32 %v690, %v739
  %v756 = vmul.f32 %v692, %v740
  %757 = vst [vmem:[%s4] sm:$0xff] %v741
  %758 = vst [vmem:[%s4 + $0x8] sm:$0xff] %v742
  %759 = vst [vmem:[%s4 + $0x10] sm:$0xff] %v743
  %760 = vst [vmem:[%s4 + $0x18] sm:$0xff] %v744
  %761 = vst [vmem:[%s4 + $0x20] sm:$0xff] %v745
  %762 = vst [vmem:[%s4 + $0x28] sm:$0xff] %v746
  %763 = vst [vmem:[%s4 + $0x30] sm:$0xff] %v747
  %764 = vst [vmem:[%s4 + $0x38] sm:$0xff] %v748
  %765 = vst [vmem:[%s4 + $0x40] sm:$0xff] %v749
  %766 = vst [vmem:[%s4 + $0x48] sm:$0xff] %v750
  %767 = vst [vmem:[%s4 + $0x50] sm:$0xff] %v751
  %768 = vst [vmem:[%s4 + $0x58] sm:$0xff] %v752
  %769 = vst [vmem:[%s4 + $0x60] sm:$0xff] %v753
  %770 = vst [vmem:[%s4 + $0x68] sm:$0xff] %v754
  %771 = vst [vmem:[%s4 + $0x70] sm:$0xff] %v755
  %772 = vst [vmem:[%s4 + $0x78] sm:$0xff] %v756
  // Predicated region
  $region18: #{actor_forward.1} parent=0 // pred_check
    _
  $region19: #{actor_forward.1} parent=0 // pred_check_branch
    %774 = sbr.rel (0) target = $region21
  $region20: #{actor_forward.1} parent=0 // pred_region
    _
  $region21: #{actor_forward.1} parent=0 // pred_fallthru
    _
  // Predicated region
  $region22: #{actor_forward.1} parent=0 // pred_check
    _
  $region23: #{actor_forward.1} parent=0 // pred_check_branch
    %776 = sbr.rel (0) target = $region25
  $region24: #{actor_forward.1} parent=0 // pred_region
    _
  $region25: #{actor_forward.1} parent=0 // pred_fallthru
    _

</llo_original>
